<compile_context>
chip_gen: v5e
topology: v5e:2x2
jax: 0.10.0
libtpu: 0.0.40
codegen_flags: <defaults>
</compile_context>

<pallas_src>
import jax
import jax.numpy as jnp
from jax import lax
from jax.experimental import pallas as pl
from jax.experimental.pallas import tpu as pltpu


def _glm_kernel(x_ref, w_ref, b_ref, o_ref):
    """One (n, k) grid step: o[B, tn] += x[B, tk] . w[tn, tk]^T (+bias at end)."""
    k = pl.program_id(1)

    @pl.when(k == 0)
    def _():
        o_ref[...] = jnp.zeros_like(o_ref)

    if o_ref.shape[-1] == 1:
        # Single output column (GLM default): VPU multiply + cross-lane sum
        # instead of a nearly-empty MXU matmul.
        o_ref[...] += jnp.sum(
            x_ref[...].astype(jnp.float32) * w_ref[...].astype(jnp.float32),
            axis=-1, keepdims=True)
    else:
        # Native-layout contraction: (B, tk) x (tn, tk) -> (B, tn) on the MXU,
        # f32 accumulation.
        o_ref[...] += lax.dot_general(
            x_ref[...], w_ref[...],
            dimension_numbers=(((1,), (1,)), ((), ())),
            preferred_element_type=jnp.float32)

    @pl.when(k == pl.num_programs(1) - 1)
    def _():
        o_ref[...] += b_ref[...]


def glm_forward(x, weight, bias, *, tk=2048, tn=512, stream_bf16=False):
    """Pallas implementation of GLM.forward.

    Args:
      x:      [B, ...] any trailing shape; flattened per batch element.
      weight: [D_out, D_in]  (native PyTorch nn.Linear layout, NOT transposed).
      bias:   [D_out]
      tk:     max K (feature/reduction) tile; rounded to a multiple of 128.
      tn:     max N (output) tile used when D_out is large and 128-aligned.
      stream_bf16: stream x/W as bf16 (f32 accumulation).  Deviates from the
        module's explicit .float(), so off by default.
    Returns:
      [B, 1, D_out] float32
    """
    B = x.shape[0]
    x_flat = jnp.reshape(x, (B, -1)).astype(jnp.float32)   # .float()
    D_in = x_flat.shape[1]
    D_out, d_in_w = weight.shape
    assert d_in_w == D_in, (d_in_w, D_in)

    w = weight.astype(jnp.float32)                          # native [D_out, D_in]
    b2d = jnp.reshape(bias, (1, D_out)).astype(jnp.float32)

    if stream_bf16:
        x_flat = x_flat.astype(jnp.bfloat16)
        w = w.astype(jnp.bfloat16)

    # ---- K (reduction) tiling: lane-dense, zero-padded (no divisibility assert).
    d_in_128 = pl.cdiv(D_in, 128) * 128
    tk_eff = max(128, (min(tk, d_in_128) // 128) * 128)
    d_in_pad = pl.cdiv(D_in, tk_eff) * tk_eff
    if d_in_pad != D_in:
        pad = d_in_pad - D_in                                # zeros: sum unchanged
        x_flat = jnp.pad(x_flat, ((0, 0), (0, pad)))
        w = jnp.pad(w, ((0, 0), (0, pad)))
    n_k = d_in_pad // tk_eff

    # ---- N (output) tiling: whole D_out when small/unaligned, else 128-aligned
    # tiles so output stores are unmasked (lane-dense) and megacore can shard.
    if D_out >= 256 and D_out % 128 == 0:
        tn_eff = max(128, (min(tn, D_out) // 128) * 128)
        while D_out % tn_eff != 0:
            tn_eff -= 128
    else:
        tn_eff = D_out
    n_n = D_out // tn_eff

    # ---- VMEM budget (double/triple-buffered streams + resident bias/output),
    # with headroom, kept well under v7x's 64 MiB physical VMEM.
    elt = 2 if stream_bf16 else 4
    tile_bytes = (3 * tn_eff * tk_eff * elt      # W (deepest-buffered stream)
                  + 2 * B * tk_eff * elt          # x
                  + 2 * tn_eff * 4                # bias
                  + 2 * B * tn_eff * 4)           # output
    vmem_limit = int(min(max(2 * tile_bytes, 16 << 20), 48 << 20))

    w_spec_kwargs = {}
    if n_k >= 4:
        # Deeper buffering on the single streamed operand for long K loops.
        w_spec_kwargs["pipeline_mode"] = pl.Buffered(3)

    cost = pl.CostEstimate(
        flops=2 * B * D_in * D_out,
        transcendentals=0,
        bytes_accessed=elt * (B * D_in + D_in * D_out) + 4 * (B * D_out + D_out),
    )

    out = pl.pallas_call(
        _glm_kernel,
        out_shape=jax.ShapeDtypeStruct((B, D_out), jnp.float32),
        grid_spec=pltpu.PrefetchScalarGridSpec(
            num_scalar_prefetch=0,
            grid=(n_n, n_k),                                   # reduction axis last
            in_specs=[
                pl.BlockSpec((B, tk_eff), lambda n, k: (0, k)),        # x
                pl.BlockSpec((tn_eff, tk_eff), lambda n, k: (n, k),    # W (native)
                             **w_spec_kwargs),
                pl.BlockSpec((1, tn_eff), lambda n, k: (0, n)),        # bias
            ],
            out_specs=pl.BlockSpec((B, tn_eff), lambda n, k: (0, n)),  # resident over K
        ),
        compiler_params=pltpu.CompilerParams(
            dimension_semantics=("parallel", "arbitrary"),
            vmem_limit_bytes=vmem_limit,
        ),
        cost_estimate=cost,
    )(x_flat, w, b2d)

    return jnp.reshape(out, (B, 1, D_out))   # match PyTorch [B, 1, D_out]


if __name__ == "__main__":
    # Small shapes consistent with the module (flatten -> Linear -> [B,1,1]).
    # D_in = 4*10*16 = 640 (deliberately NOT a multiple of 128) to exercise the
    # cdiv + zero-padding path.
    B, C, H, W = 2, 4, 10, 16
    D_in = C * H * W
    D_out = 1

    key = jax.random.PRNGKey(0)
    kx, kw, kb = jax.random.split(key, 3)

    x = jax.random.normal(kx, (B, C, H, W), dtype=jnp.float32)
    # nn.Linear(D_in, D_out) parameter shapes.
    weight = jax.random.normal(kw, (D_out, D_in), dtype=jnp.float32) * 0.02
    bias = jax.random.normal(kb, (D_out,), dtype=jnp.float32) * 0.02

    # tk=256 so this tiny demo still exercises the multi-step K accumulation
    # (640 -> padded 768 -> 3 K tiles) plus the last-step bias add.
    y = glm_forward(x, weight, bias, tk=256)
    y = jax.block_until_ready(y)

    # Reference in plain JAX (same math as the PyTorch module).
    ref = jnp.reshape(x, (B, 1, -1)).astype(jnp.float32) @ weight.T + bias
    assert y.shape == (B, 1, D_out), y.shape
    assert jnp.allclose(y, ref, atol=1e-4, rtol=1e-4), "mismatch vs reference"

    print("KERNEL_OK")
</pallas_src>

<mosaic_0001>
module attributes {stable_mosaic.version = 11 : i64} {
  func.func @_glm_kernel(%arg0: i32, %arg1: i32, %arg2: memref<2x256xf32, #tpu.memory_space<vmem>>, %arg3: memref<1x256xf32, #tpu.memory_space<vmem>>, %arg4: memref<1x1xf32, #tpu.memory_space<vmem>>, %arg5: memref<2x1xf32, #tpu.memory_space<vmem>>) attributes {dimension_semantics = [#tpu.dimension_semantics<parallel>, #tpu.dimension_semantics<arbitrary>], iteration_bounds = array<i64: 1, 3>, scalar_prefetch = 0 : i64, scratch_operands = 0 : i64, tpu.core_type = #tpu.core_type<tc>, window_params = [{transform_indices = @transform_0, window_bounds = array<i64: 2, 256>}, {transform_indices = @transform_1, window_bounds = array<i64: 1, 256>}, {transform_indices = @transform_2, window_bounds = array<i64: 1, 1>}, {transform_indices = @transform_3, window_bounds = array<i64: 2, 1>}]} {
    %c0_i32 = arith.constant 0 : i32
    %0 = arith.cmpi eq, %arg1, %c0_i32 : i32
    %1 = arith.extui %0 : i1 to i32
    %c0_i32_0 = arith.constant 0 : i32
    %2 = arith.cmpi ne, %1, %c0_i32_0 : i32
    scf.if %2 {
      %cst_9 = arith.constant 0.000000e+00 : f32
      %15 = vector.broadcast %cst_9 : f32 to vector<2x1xf32>
      %c0_10 = arith.constant 0 : index
      %c0_11 = arith.constant 0 : index
      %16 = vector.load %arg5[%c0_10, %c0_11] : memref<2x1xf32, #tpu.memory_space<vmem>>, vector<2x1xf32>
      tpu.vector_store %arg5[%c0_10, %c0_11], %15 {strides = array<i32>} : memref<2x1xf32, #tpu.memory_space<vmem>>, vector<2x1xf32>,
    } else {
    }
    %c0 = arith.constant 0 : index
    %c0_1 = arith.constant 0 : index
    %3 = vector.load %arg5[%c0, %c0_1] : memref<2x1xf32, #tpu.memory_space<vmem>>, vector<2x1xf32>
    %c0_2 = arith.constant 0 : index
    %c0_3 = arith.constant 0 : index
    %4 = vector.load %arg2[%c0_2, %c0_3] : memref<2x256xf32, #tpu.memory_space<vmem>>, vector<2x256xf32>
    %c0_4 = arith.constant 0 : index
    %c0_5 = arith.constant 0 : index
    %5 = vector.load %arg3[%c0_4, %c0_5] : memref<1x256xf32, #tpu.memory_space<vmem>>, vector<1x256xf32>
    %6 = vector.broadcast %5 : vector<1x256xf32> to vector<2x256xf32>
    %7 = arith.mulf %4, %6 : vector<2x256xf32>
    %cst = arith.constant dense<0.000000e+00> : vector<2xf32>
    %8 = vector.multi_reduction <add>, %7, %cst [1] : vector<2x256xf32> to vector<2xf32>
    %9 = vector.shape_cast %8 : vector<2xf32> to vector<2x1xf32>
    %10 = arith.addf %3, %9 : vector<2x1xf32>
    %c0_6 = arith.constant 0 : index
    %c0_7 = arith.constant 0 : index
    %11 = vector.load %arg5[%c0_6, %c0_7] : memref<2x1xf32, #tpu.memory_space<vmem>>, vector<2x1xf32>
    tpu.vector_store %arg5[%c0_6, %c0_7], %10 {strides = array<i32>} : memref<2x1xf32, #tpu.memory_space<vmem>>, vector<2x1xf32>,
    %c2_i32 = arith.constant 2 : i32
    %12 = arith.cmpi eq, %arg1, %c2_i32 : i32
    %13 = arith.extui %12 : i1 to i32
    %c0_i32_8 = arith.constant 0 : i32
    %14 = arith.cmpi ne, %13, %c0_i32_8 : i32
    scf.if %14 {
      %c0_9 = arith.constant 0 : index
      %c0_10 = arith.constant 0 : index
      %15 = vector.load %arg5[%c0_9, %c0_10] : memref<2x1xf32, #tpu.memory_space<vmem>>, vector<2x1xf32>
      %c0_11 = arith.constant 0 : index
      %c0_12 = arith.constant 0 : index
      %16 = vector.load %arg4[%c0_11, %c0_12] : memref<1x1xf32, #tpu.memory_space<vmem>>, vector<1x1xf32>
      %17 = vector.broadcast %16 : vector<1x1xf32> to vector<2x1xf32>
      %18 = arith.addf %15, %17 : vector<2x1xf32>
      %c0_13 = arith.constant 0 : index
      %c0_14 = arith.constant 0 : index
      %19 = vector.load %arg5[%c0_13, %c0_14] : memref<2x1xf32, #tpu.memory_space<vmem>>, vector<2x1xf32>
      tpu.vector_store %arg5[%c0_13, %c0_14], %18 {strides = array<i32>} : memref<2x1xf32, #tpu.memory_space<vmem>>, vector<2x1xf32>,
    } else {
    }
    return
  }
  func.func @transform_0(%arg0: i32, %arg1: i32) -> (i32, i32) {
    %c0_i32 = arith.constant 0 : i32
    %c0_i32_0 = arith.constant 0 : i32
    return %c0_i32, %arg1 : i32, i32
  }
  func.func @transform_1(%arg0: i32, %arg1: i32) -> (i32, i32) {
    %c0_i32 = arith.constant 0 : i32
    return %arg0, %arg1 : i32, i32
  }
  func.func @transform_2(%arg0: i32, %arg1: i32) -> (i32, i32) {
    %c0_i32 = arith.constant 0 : i32
    %c0_i32_0 = arith.constant 0 : i32
    return %c0_i32, %arg0 : i32, i32
  }
  func.func @transform_3(%arg0: i32, %arg1: i32) -> (i32, i32) {
    %c0_i32 = arith.constant 0 : i32
    %c0_i32_0 = arith.constant 0 : i32
    return %c0_i32, %arg0 : i32, i32
  }
}

</mosaic_0001>

<llo_original>
// kernel: tpu_custom_call.1
$region0: #{tpu_custom_call.1}
  #allocation0 [shape = 'u32[]', space=smem, size = 0x4, offset = 0x4, fixed_abs, tag = 'smem constant byte address 0x4 - core index']
  #allocation1 [shape = 'u32[72,128]{1,0:T(1,128)}', space=vmem, size = 0x9000, scoped, tag = 'internal scratch']
  #allocation2 [shape = 'f32[1,1]{1,0:T(1,128)S(1)}', space=vmem, size = 0x200, scoped, tag = 'scoped memory for tpu_custom_call.1']
  %s0 = inlined_call_operand.hbm [shape: f32[2,768], index: 0, kind: input, shape index: {}]
  %s1 = inlined_call_operand.hbm [shape: f32[1,768], index: 1, kind: input, shape index: {}]
  %s2 = inlined_call_operand.<no memory space> [shape: f32[1,1], index: 2, kind: input, shape index: {}]
  %s3 = inlined_call_operand.vmem [shape: f32[2,1], index: 3, kind: output, shape index: {}]
  %s4 = sld [smem:[#allocation0]]
  $region61: #{tpu_custom_call.1} parent=0
    _
  %s6 = ssub.s32 1, %s4
  %s7 = scalar_select 0, %s6, %s4
  %v8 = vstv %s2
  %9 = vst [vmem:[#allocation2] sm:$0x1] %v8
  $region1: #{tpu_custom_call.1} parent=0
    #allocation3 [shape = 'u8[4096]{0}', space=vmem, size = 0x1000, scoped, tag = 'input window, operand 0']
    #allocation4 [shape = 's32[2]{0}', space=sflag, size = 0x8, scoped, tag = 'scoped memory for tpu_custom_call.1']
    #allocation5 [shape = 'u8[2048]{0}', space=vmem, size = 0x800, scoped, tag = 'input window, operand 1']
    #allocation6 [shape = 's32[2]{0}', space=sflag, size = 0x8, scoped, tag = 'scoped memory for tpu_custom_call.1']
    %10 = vsyncpa [#allocation4], 0
    %s11 = scalar_lea.sflag [#allocation4], 1
    %12 = vsyncpa %s11, 0
    %13 = vsyncpa [#allocation6], 0
    %s14 = scalar_lea.sflag [#allocation6], 1
    %15 = vsyncpa %s14, 0
    loop: start=0, step=1, limit=5
    $region2: #{tpu_custom_call.1} parent=1 // loop_pre_header
      _
    $region3: #{tpu_custom_call.1} parent=1 // loop_header
      %s17 = sphi 0, %s21
      %p18 = scmp.ge.s32.totalorder %s17, 5
      %s24 = sphi 0, %s36
      %s25 = sphi 0, %s32
      %s26 = sphi 0, %s24
      %s27 = sphi 0, %s25
      %s28 = sphi 0, %s26
      %s29 = sphi 0, %s27
      %s39 = sphi 0, %s41
      %s42 = sphi 0, %s39
      %s43 = sphi 0, %s42
      %s59 = sphi 0, %s43
      %s67 = sphi 0, %s69
      %s70 = sphi 0, %s67
      %s71 = sphi 0, %s70
      %s87 = sphi 0, %s71
      %s93 = sphi 0, %s95
      %s96 = sphi 0, %s93
      %s97 = sphi 0, %s96
      %s113 = sphi 0, %s97
      %s119 = sphi 0, %s121
      %s122 = sphi 0, %s119
      %s123 = sphi 0, %s122
      %s139 = sphi 0, %s123
    $region4: #{tpu_custom_call.1} parent=1 // loop_header_branch
      %20 = sbr.rel (%p18) target = $region8
    $region5: #{tpu_custom_call.1} parent=1 // loop_body
      %s22 = ssub.s32 %s17, 1
      %s23 = ssub.s32 %s17, 2
      %s30 = sadd.s32 1, %s25
      %p31 = scmp.ge.s32.totalorder %s30, 3
      %s32 = scalar_select %p31, 0, %s30
      %s33 = sadd.s32 1, %s24
      %s34 = scalar_select %p31, %s33, %s24
      %p35 = scmp.ge.s32.totalorder %s34, 1
      %s36 = scalar_select %p35, 0, %s34
      %s37 = ssub.s32 %s25, %s32
      %p38 = scmp.eq.s32.totalorder %s37, 0
      %s40 = sadd.s32 %s39, 1
      %s41 = scalar_select %p38, %s39, %s40
      %p44 = pneg %p38
      %p45 = scmp.eq.s32.totalorder %s17, 2
      %p46 = por %p44, %p45
      %p47 = scmp.ne.s32.totalorder %s39, %s42
      %p48 = scmp.eq.s32.totalorder %s17, 0
      %p49 = por %p47, %p48
      %p50 = scmp.ne.s32.totalorder %s39, %s42
      %p51 = scmp.eq.s32.totalorder %s22, 2
      %p52 = por %p50, %p51
      %p53 = scmp.ne.s32.totalorder %s42, %s43
      %p54 = scmp.eq.s32.totalorder %s22, 0
      %p55 = por %p53, %p54
      %p56 = scmp.ne.s32.totalorder %s42, %s43
      %p57 = scmp.eq.s32.totalorder %s23, 2
      %p58 = por %p56, %p57
      %p60 = scmp.ne.s32.totalorder %s43, %s59
      %p61 = scmp.eq.s32.totalorder %s23, 0
      %p62 = por %p60, %p61
      %s63 = ssub.s32 %s24, %s36
      %s64 = ssub.s32 %s25, %s32
      %s65 = sor.u32 %s63, %s64
      %p66 = scmp.eq.s32.totalorder %s65, 0
      %s68 = sadd.s32 %s67, 1
      %s69 = scalar_select %p66, %s67, %s68
      %p72 = pneg %p66
      %p73 = scmp.eq.s32.totalorder %s17, 2
      %p74 = por %p72, %p73
      %p75 = scmp.ne.s32.totalorder %s67, %s70
      %p76 = scmp.eq.s32.totalorder %s17, 0
      %p77 = por %p75, %p76
      %p78 = scmp.ne.s32.totalorder %s67, %s70
      %p79 = scmp.eq.s32.totalorder %s22, 2
      %p80 = por %p78, %p79
      %p81 = scmp.ne.s32.totalorder %s70, %s71
      %p82 = scmp.eq.s32.totalorder %s22, 0
      %p83 = por %p81, %p82
      %p84 = scmp.ne.s32.totalorder %s70, %s71
      %p85 = scmp.eq.s32.totalorder %s23, 2
      %p86 = por %p84, %p85
      %p88 = scmp.ne.s32.totalorder %s71, %s87
      %p89 = scmp.eq.s32.totalorder %s23, 0
      %p90 = por %p88, %p89
      %s91 = ssub.s32 %s24, %s36
      %p92 = scmp.eq.s32.totalorder %s91, 0
      %s94 = sadd.s32 %s93, 1
      %s95 = scalar_select %p92, %s93, %s94
      %p98 = pneg %p92
      %p99 = scmp.eq.s32.totalorder %s17, 2
      %p100 = por %p98, %p99
      %p101 = scmp.ne.s32.totalorder %s93, %s96
      %p102 = scmp.eq.s32.totalorder %s17, 0
      %p103 = por %p101, %p102
      %p104 = scmp.ne.s32.totalorder %s93, %s96
      %p105 = scmp.eq.s32.totalorder %s22, 2
      %p106 = por %p104, %p105
      %p107 = scmp.ne.s32.totalorder %s96, %s97
      %p108 = scmp.eq.s32.totalorder %s22, 0
      %p109 = por %p107, %p108
      %p110 = scmp.ne.s32.totalorder %s96, %s97
      %p111 = scmp.eq.s32.totalorder %s23, 2
      %p112 = por %p110, %p111
      %p114 = scmp.ne.s32.totalorder %s97, %s113
      %p115 = scmp.eq.s32.totalorder %s23, 0
      %p116 = por %p114, %p115
      %s117 = ssub.s32 %s24, %s36
      %p118 = scmp.eq.s32.totalorder %s117, 0
      %s120 = sadd.s32 %s119, 1
      %s121 = scalar_select %p118, %s119, %s120
      %p124 = pneg %p118
      %p125 = scmp.eq.s32.totalorder %s17, 2
      %p126 = por %p124, %p125
      %p127 = scmp.ne.s32.totalorder %s119, %s122
      %p128 = scmp.eq.s32.totalorder %s17, 0
      %p129 = por %p127, %p128
      %p130 = scmp.ne.s32.totalorder %s119, %s122
      %p131 = scmp.eq.s32.totalorder %s22, 2
      %p132 = por %p130, %p131
      %p133 = scmp.ne.s32.totalorder %s122, %s123
      %p134 = scmp.eq.s32.totalorder %s22, 0
      %p135 = por %p133, %p134
      %p136 = scmp.ne.s32.totalorder %s122, %s123
      %p137 = scmp.eq.s32.totalorder %s23, 2
      %p138 = por %p136, %p137
      %p140 = scmp.ne.s32.totalorder %s123, %s139
      %p141 = scmp.eq.s32.totalorder %s23, 0
      %p142 = por %p140, %p141
      %p143 = scmp.le.s32.totalorder 1, %s17
      %p144 = scmp.lt.s32.totalorder %s17, 4
      %p145 = pnand %p143, %p144
      %p146 = pneg %p145
      // Predicated region
      $region9: #{tpu_custom_call.1} parent=5 // pred_check
        _
      $region10: #{tpu_custom_call.1} parent=5 // pred_check_branch
        %148 = sbr.rel (%p145) target = $region12
      $region11: #{tpu_custom_call.1} parent=5 // pred_region
        %s149 = ssub.s32 %s17, 1
        // Predicated region
        $region13: #{tpu_custom_call.1} parent=11 // pred_check
          %p150 = pneg %p109
        $region14: #{tpu_custom_call.1} parent=11 // pred_check_branch
          %152 = sbr.rel (%p150) target = $region16
        $region15: #{tpu_custom_call.1} parent=11 // pred_region
          %p153 = scmp.lt.s32.totalorder %s26, 0
          %s154 = scalar_select %p153, %s26, 0
          %s155 = scalar_lea.vmem [#allocation2], %s154
        $region16: #{tpu_custom_call.1} parent=11 // pred_fallthru
          _
      $region12: #{tpu_custom_call.1} parent=5 // pred_fallthru
        _
      %p156 = scmp.lt.s32.totalorder %s17, 3
      // Predicated region
      $region17: #{tpu_custom_call.1} parent=5 // pred_check
        %p157 = pneg %p156
      $region18: #{tpu_custom_call.1} parent=5 // pred_check_branch
        %159 = sbr.rel (%p157) target = $region20
      $region19: #{tpu_custom_call.1} parent=5 // pred_region
        // Predicated region
        $region21: #{tpu_custom_call.1} parent=19 // pred_check
          %p160 = pneg %p49
        $region22: #{tpu_custom_call.1} parent=19 // pred_check_branch
          %162 = sbr.rel (%p160) target = $region24
        $region23: #{tpu_custom_call.1} parent=19 // pred_region
          %s163 = sand.u32 %s39, 1
          %s164 = scalar_lea.sflag [#allocation4], %s163
          %s165 = sand.u32 %s39, 1
          %s166 = smul.addr %s165, 4
          %s167 = scalar_lea.vmem [#allocation3], %s166
          %s168 = smul.u32 2, %s25
          %170 = vsyncadd %s164, 0
          %s171 = smul.addr %s168, 2
          %s172 = scalar_lea.hbm %s0, %s171
          %s174 = sshll.u32 %s172, 4
          %s175 = int_to_ptr.hbm [resolvable:$true] %s174
          %s176 = sshll.u32 %s167, 4
          %s177 = int_to_ptr.vmem [resolvable:$true] %s176
          %179 = dma.hbm_to_vmem [thread:$0]  %s175, 64, %s177, %s164
        $region24: #{tpu_custom_call.1} parent=19 // pred_fallthru
          _
        // Predicated region
        $region25: #{tpu_custom_call.1} parent=19 // pred_check
          %p180 = pneg %p77
        $region26: #{tpu_custom_call.1} parent=19 // pred_check_branch
          %182 = sbr.rel (%p180) target = $region28
        $region27: #{tpu_custom_call.1} parent=19 // pred_region
          %s183 = sand.u32 %s67, 1
          %s184 = scalar_lea.sflag [#allocation6], %s183
          %s185 = sand.u32 %s67, 1
          %s186 = smul.addr %s185, 2
          %s187 = scalar_lea.vmem [#allocation5], %s186
          %s188 = smul.u32 2, %s25
          %190 = vsyncadd %s184, 0
          %s191 = smul.addr %s24, 6
          %s192 = sadd.s32 %s188, %s191
          %s193 = scalar_lea.hbm %s1, %s192
          %s195 = sshll.u32 %s193, 4
          %s196 = int_to_ptr.hbm [resolvable:$true] %s195
          %s197 = sshll.u32 %s187, 4
          %s198 = int_to_ptr.vmem [resolvable:$true] %s197
          %200 = dma.hbm_to_vmem [thread:$0]  %s196, 32, %s198, %s184
        $region28: #{tpu_custom_call.1} parent=19 // pred_fallthru
          _
      $region20: #{tpu_custom_call.1} parent=5 // pred_fallthru
        _
      %p201 = scmp.le.s32.totalorder 1, %s17
      %p202 = scmp.lt.s32.totalorder %s17, 4
      %p203 = pnand %p201, %p202
      %p204 = pneg %p203
      // Predicated region
      $region29: #{tpu_custom_call.1} parent=5 // pred_check
        _
      $region30: #{tpu_custom_call.1} parent=5 // pred_check_branch
        %206 = sbr.rel (%p203) target = $region32
      $region31: #{tpu_custom_call.1} parent=5 // pred_region
        %s207 = ssub.s32 %s17, 1
        %s208 = sand.u32 %s42, 1
        %s209 = scalar_lea.sflag [#allocation4], %s208
        %s210 = sand.u32 %s42, 1
        %s211 = smul.addr %s210, 4
        %s212 = scalar_lea.vmem [#allocation3], %s211
        // Predicated region
        $region33: #{tpu_custom_call.1} parent=31 // pred_check
          %p213 = pneg %p55
        $region34: #{tpu_custom_call.1} parent=31 // pred_check_branch
          %215 = sbr.rel (%p213) target = $region36
        $region35: #{tpu_custom_call.1} parent=31 // pred_region
          %217 = dma.done %s209, 64
        $region36: #{tpu_custom_call.1} parent=31 // pred_fallthru
          _
        %s218 = sand.u32 %s70, 1
        %s219 = scalar_lea.sflag [#allocation6], %s218
        %s220 = sand.u32 %s70, 1
        %s221 = smul.addr %s220, 2
        %s222 = scalar_lea.vmem [#allocation5], %s221
        // Predicated region
        $region37: #{tpu_custom_call.1} parent=31 // pred_check
          %p223 = pneg %p83
        $region38: #{tpu_custom_call.1} parent=31 // pred_check_branch
          %225 = sbr.rel (%p223) target = $region40
        $region39: #{tpu_custom_call.1} parent=31 // pred_region
          %227 = dma.done %s219, 32
        $region40: #{tpu_custom_call.1} parent=31 // pred_fallthru
          _
        %s228 = sand.u32 %s42, 1
        %s229 = scalar_lea.sflag [#allocation4], %s228
        %s230 = sand.u32 %s42, 1
        %s231 = smul.addr %s230, 4
        %s232 = scalar_lea.vmem [#allocation3], %s231
        %p233 = pneg %p55
        %p234 = pneg %p52
        %s235 = sand.u32 %s70, 1
        %s236 = scalar_lea.sflag [#allocation6], %s235
        %s237 = sand.u32 %s70, 1
        %s238 = smul.addr %s237, 2
        %s239 = scalar_lea.vmem [#allocation5], %s238
        %p240 = pneg %p83
        %p241 = pneg %p80
        %p242 = scmp.lt.s32.totalorder %s26, 0
        %s243 = scalar_select %p242, %s26, 0
        %s244 = scalar_lea.vmem [#allocation2], %s243
        %p245 = pneg %p109
        %p246 = pneg %p106
        %p247 = pneg %p135
        %p248 = pneg %p132
        %p249 = scmp.lt.s32.totalorder %s26, 0
        %s250 = scalar_select %p249, %s26, 0
        %s251 = smul.addr %s250, 2
        %s252 = scalar_lea.vmem %s3, %s251
        %s253 = smul.u32 2, %s27
        %s254 = smul.u32 2, %s27
        %p255 = scmp.lt.s32.totalorder %s26, 0
        %s256 = scalar_select %p255, %s26, 0
        %s257 = scalar_lea.vmem [#allocation2], %s256
        %p258 = scmp.lt.s32.totalorder %s26, 0
        %s259 = scalar_select %p258, %s26, 0
        %s260 = smul.addr %s259, 2
        %s261 = scalar_lea.vmem %s3, %s260
        %p262 = scmp.eq.s32.totalorder %s27, 0
        // Predicated region
        $region41: #{tpu_custom_call.1} parent=31 // pred_check
          %p263 = pneg %p262
        $region42: #{tpu_custom_call.1} parent=31 // pred_check_branch
          %265 = sbr.rel (%p263) target = $region44
        $region43: #{tpu_custom_call.1} parent=31 // pred_region
          %vm266 = vcmask 1024
          %267 = vst.msk [vmem:[%s261] sm:$0x3] %vm266, 0.0
        $region44: #{tpu_custom_call.1} parent=31 // pred_fallthru
          _
        %v268 = vld [vmem:[%s261] sm:$0x3]
        %v269 = vld [vmem:[%s212] sm:$0xf]
        %v270 = vld [vmem:[%s222] sm:$0x3]
        %v272 = vperm.slane %v270, 0
        %v273 = vperm.slane %v270, 1
        %v274 = vrot.slane %v273, 6
        %vm275 = vcmask 1041408
        %v276 = vsel %vm275, %v272, %v274
        %v278 = vmul.f32 %v269, %v276
        %280 = vst [vmem:[#allocation1] ss:$4 sm:$0xff] %v278
        %v281 = vld.sshfl [vmem:[#allocation1] sm:$0xff pattern:$0x73625140]
        %v282 = vld.sshfl [vmem:[#allocation1 + $0x8] sm:$0xff pattern:$0x73625140]
        %v285 = vsel %vm275, %v281, 0.0
        %v286 = vsel %vm275, %v282, 0.0
        %v287 = vadd.f32 %v285, %v286
        %288 = vadd.xlane.f32.xlu0 %v287
        %v289 = vpop.xlane.xlu0 %288
        %v290 = vadd.f32 %v268, %v289
        %vm291 = vcmask 1024
        %292 = vst.msk [vmem:[%s261] sm:$0x3] %vm291, %v290
        %p293 = scmp.eq.s32.totalorder %s27, 2
        // Predicated region
        $region45: #{tpu_custom_call.1} parent=31 // pred_check
          %p294 = pneg %p293
        $region46: #{tpu_custom_call.1} parent=31 // pred_check_branch
          %296 = sbr.rel (%p294) target = $region48
        $region47: #{tpu_custom_call.1} parent=31 // pred_region
          %v297 = vld [vmem:[%s261] sm:$0x3]
          %v298 = vld [vmem:[%s257] sm:$0x1]
          %v300 = vperm.slane %v298, 0
          %v302 = vadd.f32 %v297, %v300
          %303 = vst.msk [vmem:[%s261] sm:$0x3] %vm291, %v302
        $region48: #{tpu_custom_call.1} parent=31 // pred_fallthru
          _
        %p304 = scmp.lt.s32.totalorder %s26, 0
        %s305 = scalar_select %p304, %s26, 0
        %s306 = smul.addr %s305, 2
        %s307 = scalar_lea.vmem %s3, %s306
        // Predicated region
        $region49: #{tpu_custom_call.1} parent=31 // pred_check
          %p308 = pneg %p132
        $region50: #{tpu_custom_call.1} parent=31 // pred_check_branch
          %310 = sbr.rel (%p308) target = $region52
        $region51: #{tpu_custom_call.1} parent=31 // pred_region
          _
        $region52: #{tpu_custom_call.1} parent=31 // pred_fallthru
          _
        // Predicated region
        $region53: #{tpu_custom_call.1} parent=31 // pred_check
          %p311 = pneg %p132
        $region54: #{tpu_custom_call.1} parent=31 // pred_check_branch
          %313 = sbr.rel (%p311) target = $region56
        $region55: #{tpu_custom_call.1} parent=31 // pred_region
          %p314 = scmp.lt.s32.totalorder %s26, 0
          %s315 = scalar_select %p314, %s26, 0
          %s316 = smul.addr %s315, 2
          %s317 = scalar_lea.vmem %s3, %s316
        $region56: #{tpu_custom_call.1} parent=31 // pred_fallthru
          _
      $region32: #{tpu_custom_call.1} parent=5 // pred_fallthru
        _
      %p318 = scmp.le.s32.totalorder 2, %s17
      // Predicated region
      $region57: #{tpu_custom_call.1} parent=5 // pred_check
        %p319 = pneg %p318
      $region58: #{tpu_custom_call.1} parent=5 // pred_check_branch
        %321 = sbr.rel (%p319) target = $region60
      $region59: #{tpu_custom_call.1} parent=5 // pred_region
        %s322 = ssub.s32 %s17, 2
      $region60: #{tpu_custom_call.1} parent=5 // pred_fallthru
        _
    $region6: #{tpu_custom_call.1} parent=1 // loop_footer
      %s21 = sadd.s32 1, %s17
    $region7: #{tpu_custom_call.1} parent=1 // loop_footer_branch
      %16 = sbr.rel target = $region3
    $region8: #{tpu_custom_call.1} parent=1 // loop_exit
      _
    %323 = vsyncpa [#allocation4], 1
    %s324 = scalar_lea.sflag [#allocation4], 1
    %325 = vsyncpa %s324, 1
    %326 = vsyncpa [#allocation6], 1
    %s327 = scalar_lea.sflag [#allocation6], 1
    %328 = vsyncpa %s327, 1

</llo_original>
